<compile_context>
chip_gen: v5e
topology: v5e:2x2
jax: 0.10.0
libtpu: 0.0.40
codegen_flags: <defaults>
</compile_context>

<pallas_src>
import functools

import jax
import jax.numpy as jnp
from jax.experimental import pallas as pl
from jax.experimental.pallas import tpu as pltpu


def _round_up(x, m):
    return ((x + m - 1) // m) * m


def _sublane_multiple(dtype):
    # 8 for f32, 16 for bf16, 32 for int8/fp8
    return max(8, 32 // jnp.dtype(dtype).itemsize)


def _num_tensorcores():
    """2 on v7x-class chips (dual TensorCore), else 1."""
    try:
        kind = (jax.devices()[0].device_kind or "").lower()
    except Exception:  # pragma: no cover - defensive
        kind = ""
    return 2 if "v7" in kind else 1


# ----------------------------- activations (f32) -----------------------------

def _elu_f32(x):
    # exp only on the non-positive branch -> no inf generated for large positive x
    return jnp.where(x > 0, x, jnp.exp(jnp.minimum(x, 0.0)) - 1.0)


def _relu_f32(x):
    return jnp.maximum(x, 0.0)


_ACTIVATIONS = {"elu": _elu_f32, "relu": _relu_f32, "identity": lambda x: x}


# --------------------------------- kernels -----------------------------------

def _proj_residual_kernel(act, accum_ref, h_ref, wt_ref, out_ref):
    # out = act(accum + h @ W^T); wt_ref holds W^T -> (indim, hiddendim).
    # Operands stay in native dtype (bf16 -> full-rate MXU); f32 accumulation only.
    proj = jnp.dot(h_ref[...], wt_ref[...], preferred_element_type=jnp.float32)
    ret = accum_ref[...].astype(jnp.float32) + proj
    out_ref[...] = act(ret).astype(out_ref.dtype)


def _proj_residual_ktiled_kernel(act, accum_ref, h_ref, wt_ref, out_ref, acc_ref):
    # grid = (node tiles, K tiles); acc_ref is a resident f32 accumulator.
    k = pl.program_id(1)

    @pl.when(k == 0)
    def _():
        acc_ref[...] = jnp.zeros_like(acc_ref)

    acc_ref[...] += jnp.dot(h_ref[...], wt_ref[...],
                            preferred_element_type=jnp.float32)

    @pl.when(k == pl.num_programs(1) - 1)
    def _():
        ret = acc_ref[...] + accum_ref[...].astype(jnp.float32)
        out_ref[...] = act(ret).astype(out_ref.dtype)


def _identity_residual_kernel(act, accum_ref, h_ref, out_ref):
    ret = accum_ref[...].astype(jnp.float32) + h_ref[...].astype(jnp.float32)
    out_ref[...] = act(ret).astype(out_ref.dtype)


def _activation_only_kernel(act, accum_ref, out_ref):
    out_ref[...] = act(accum_ref[...].astype(jnp.float32)).astype(out_ref.dtype)


# ------------------------------ tiling heuristics -----------------------------

def _pick_tile_k(indim):
    for t in (512, 384, 256, 128):
        if indim % t == 0:
            return t
    return None


def _pick_tile_n(n, per_row_bytes, sub, budget_bytes=12 << 20, cap=2048):
    """Largest node tile (multiple of `sub`) fitting the VMEM budget.

    Only on multi-TensorCore chips (v7x) do we shrink the tile to keep an even
    number (>=2) of grid steps so dimension_semantics=("parallel",) can feed
    both cores.  On single-TC v5e/v6e the biggest tile wins (roofline knee is
    around 512+ rows; each extra grid step costs ~0.35 us for nothing).
    """
    n_up = _round_up(max(n, 1), sub)
    t = (budget_bytes // max(per_row_bytes, 1)) // sub * sub
    t = max(sub, min(cap, t))
    if _num_tensorcores() > 1 and n_up >= 2 * sub:
        steps = max(2, -(-n_up // t))
        steps += steps % 2                       # prefer an even step count
        t = min(t, _round_up(-(-n_up // steps), sub))
    return max(sub, min(t, n_up))


# --------------------------------- wrapper -----------------------------------

def gat_finalize(accum, h=None, weight=None, *, residual=True, activation="elu",
                 weight_is_transposed=False, tile_n=None, tile_k=None,
                 k_split_min_indim=1024, interpret=False):
    """Pallas implementation of GATFinalize.forward.

    accum:  (N, hiddendim)  aggregated neighbor features (nodes.data['accum'])
    h:      (N, indim)      node input features (nodes.data['h']); needed iff residual
    weight: residual_fc weight.  torch layout (hiddendim, indim) by default, or
            pre-transposed (indim, hiddendim) with weight_is_transposed=True.
    activation: "elu" | "relu" | "identity" | any elementwise jnp-callable.
    """
    act = activation if callable(activation) else _ACTIVATIONS[activation]
    n, hiddendim = accum.shape
    out_dtype = accum.dtype
    acc_isz = jnp.dtype(accum.dtype).itemsize
    out_isz = jnp.dtype(out_dtype).itemsize

    use_proj = use_identity = False
    indim = None
    if residual:
        assert h is not None, "residual path needs nodes.data['h']"
        assert h.shape[0] == n
        indim = h.shape[-1]
        if indim != hiddendim:
            assert weight is not None
            use_proj = True
        else:
            use_identity = True

    sub = _sublane_multiple(accum.dtype)
    if residual:
        sub = max(sub, _sublane_multiple(h.dtype))

    out_shape = jax.ShapeDtypeStruct((n, hiddendim), out_dtype)

    # -------------------- residual projection (indim != hiddendim) --------------------
    if use_proj:
        h_isz = jnp.dtype(h.dtype).itemsize
        if weight_is_transposed:
            w_t = weight
            assert w_t.shape == (indim, hiddendim)
        else:
            assert weight.shape == (hiddendim, indim)
            # TODO(synk): hoist this transpose to parameter-init time for repeated calls.
            w_t = jnp.transpose(weight)
        w_isz = jnp.dtype(w_t.dtype).itemsize

        if tile_k is None and indim >= k_split_min_indim:
            tile_k = _pick_tile_k(indim)
        ktiled = tile_k is not None and 0 < tile_k <= indim and indim % tile_k == 0

        k_block = tile_k if ktiled else indim
        w_block_bytes = 2 * k_block * hiddendim * w_isz          # conservative: 2 bufs
        per_row = (2 * hiddendim * acc_isz                       # accum (dbl-buffered)
                   + 2 * hiddendim * out_isz                     # out   (dbl-buffered)
                   + 2 * k_block * h_isz                         # h     (dbl-buffered)
                   + 2 * hiddendim * 4)                          # f32 ret/proj temps
        if ktiled:
            per_row += hiddendim * 4                             # f32 accumulator
        budget = max(2 << 20, (12 << 20) - w_block_bytes)
        if tile_n is None:
            tile_n = _pick_tile_n(n, per_row, sub, budget_bytes=budget)
        tile_n = max(sub, (tile_n // sub) * sub)

        vmem_est = per_row * tile_n + w_block_bytes
        vmem_limit = int(min(32 << 20, max(16 << 20, vmem_est + (4 << 20))))
        grid_n = pl.cdiv(n, tile_n)

        cost = pl.CostEstimate(
            flops=2 * n * indim * hiddendim + 2 * n * hiddendim,
            transcendentals=n * hiddendim,
            bytes_accessed=(n * hiddendim * acc_isz + n * indim * h_isz
                            + indim * hiddendim * w_isz + n * hiddendim * out_isz))

        if ktiled:
            return pl.pallas_call(
                functools.partial(_proj_residual_ktiled_kernel, act),
                out_shape=out_shape,
                grid=(grid_n, indim // tile_k),
                in_specs=[
                    pl.BlockSpec((tile_n, hiddendim), lambda i, k: (i, 0)),
                    pl.BlockSpec((tile_n, tile_k), lambda i, k: (i, k)),
                    pl.BlockSpec((tile_k, hiddendim), lambda i, k: (k, 0)),
                ],
                out_specs=pl.BlockSpec((tile_n, hiddendim), lambda i, k: (i, 0)),
                scratch_shapes=[pltpu.VMEM((tile_n, hiddendim), jnp.float32)],
                compiler_params=pltpu.CompilerParams(
                    dimension_semantics=("parallel", "arbitrary"),
                    vmem_limit_bytes=vmem_limit),
                cost_estimate=cost,
                interpret=interpret,
            )(accum, h, w_t)

        return pl.pallas_call(
            functools.partial(_proj_residual_kernel, act),
            out_shape=out_shape,
            grid=(grid_n,),
            in_specs=[
                pl.BlockSpec((tile_n, hiddendim), lambda i: (i, 0)),
                pl.BlockSpec((tile_n, indim), lambda i: (i, 0)),
                pl.BlockSpec((indim, hiddendim), lambda i: (0, 0)),   # resident W^T
            ],
            out_specs=pl.BlockSpec((tile_n, hiddendim), lambda i: (i, 0)),
            compiler_params=pltpu.CompilerParams(
                dimension_semantics=("parallel",),
                vmem_limit_bytes=vmem_limit),
            cost_estimate=cost,
            interpret=interpret,
        )(accum, h, w_t)

    # --------------------------- elementwise-only paths ---------------------------
    # (Kept as Pallas kernels for completeness; plain XLA would fuse these with the
    #  upstream aggregation — see notes.)
    per_row = 2 * hiddendim * acc_isz + 2 * hiddendim * out_isz + 2 * hiddendim * 4
    if use_identity:
        per_row += 2 * hiddendim * jnp.dtype(h.dtype).itemsize
    if tile_n is None:
        tile_n = _pick_tile_n(n, per_row, sub)
    tile_n = max(sub, (tile_n // sub) * sub)
    vmem_limit = int(min(32 << 20, max(16 << 20, per_row * tile_n + (4 << 20))))
    grid_n = pl.cdiv(n, tile_n)
    row_spec = pl.BlockSpec((tile_n, hiddendim), lambda i: (i, 0))
    cparams = pltpu.CompilerParams(dimension_semantics=("parallel",),
                                   vmem_limit_bytes=vmem_limit)

    if use_identity:
        cost = pl.CostEstimate(
            flops=2 * n * hiddendim, transcendentals=n * hiddendim,
            bytes_accessed=n * hiddendim * (acc_isz + jnp.dtype(h.dtype).itemsize + out_isz))
        return pl.pallas_call(
            functools.partial(_identity_residual_kernel, act),
            out_shape=out_shape, grid=(grid_n,),
            in_specs=[row_spec, row_spec], out_specs=row_spec,
            compiler_params=cparams, cost_estimate=cost, interpret=interpret,
        )(accum, h)

    cost = pl.CostEstimate(
        flops=n * hiddendim, transcendentals=n * hiddendim,
        bytes_accessed=n * hiddendim * (acc_isz + out_isz))
    return pl.pallas_call(
        functools.partial(_activation_only_kernel, act),
        out_shape=out_shape, grid=(grid_n,),
        in_specs=[row_spec], out_specs=row_spec,
        compiler_params=cparams, cost_estimate=cost, interpret=interpret,
    )(accum)


# ----------------------------------- test -------------------------------------

if __name__ == "__main__":
    key = jax.random.PRNGKey(0)
    k1, k2, k3, k4, k5, k6 = jax.random.split(key, 6)

    def elu_ref(x):
        return jnp.where(x > 0, x, jnp.exp(jnp.minimum(x, 0.0)) - 1.0)

    # Small GAT-ish shapes; N deliberately NOT a multiple of 8 so the ragged last
    # block path (no wrapper padding / slicing) is exercised.
    N, INDIM, HIDDEN = 50, 32, 128
    accum = jax.random.normal(k1, (N, HIDDEN), dtype=jnp.float32)
    h = jax.random.normal(k2, (N, INDIM), dtype=jnp.float32)
    # mimic nn.init.xavier_normal_(gain=1.414) scaling for residual_fc weight
    w = jax.random.normal(k3, (HIDDEN, INDIM), dtype=jnp.float32) * (
        1.414 * (2.0 / (INDIM + HIDDEN)) ** 0.5)

    # 1) residual with projection (indim != hiddendim), torch-layout weight
    out = jax.block_until_ready(gat_finalize(accum, h, w, residual=True, activation="elu"))
    ref = elu_ref(accum + h @ w.T)
    assert out.shape == (N, HIDDEN)
    assert jnp.allclose(out, ref, atol=1e-2, rtol=1e-2), float(jnp.max(jnp.abs(out - ref)))

    # 1b) same math with bf16 inputs and a pre-transposed (hoisted) weight
    out_b = jax.block_until_ready(gat_finalize(
        accum.astype(jnp.bfloat16), h.astype(jnp.bfloat16),
        jnp.transpose(w).astype(jnp.bfloat16),
        residual=True, activation="elu", weight_is_transposed=True))
    assert jnp.allclose(out_b.astype(jnp.float32), ref, atol=1e-1, rtol=1e-1)

    # 2) large indim -> K-tiled accumulator path (2 K steps of 512)
    INDIM2 = 1024
    h2 = jax.random.normal(k4, (N, INDIM2), dtype=jnp.float32)
    w2 = jax.random.normal(k5, (HIDDEN, INDIM2), dtype=jnp.float32) * (
        1.414 * (2.0 / (INDIM2 + HIDDEN)) ** 0.5)
    out2 = jax.block_until_ready(gat_finalize(accum, h2, w2, residual=True, activation="elu"))
    ref2 = elu_ref(accum + h2 @ w2.T)
    assert jnp.allclose(out2, ref2, atol=1e-2, rtol=1e-2), float(jnp.max(jnp.abs(out2 - ref2)))

    # 3) residual with identity (indim == hiddendim)
    h_same = jax.random.normal(k6, (N, HIDDEN), dtype=jnp.float32)
    out3 = jax.block_until_ready(gat_finalize(accum, h_same, None, residual=True, activation="elu"))
    assert jnp.allclose(out3, elu_ref(accum + h_same), atol=1e-5, rtol=1e-5)

    # 4) no residual
    out4 = jax.block_until_ready(gat_finalize(accum, residual=False, activation="elu"))
    assert jnp.allclose(out4, elu_ref(accum), atol=1e-5, rtol=1e-5)

    print("KERNEL_OK")
</pallas_src>

<mosaic_0001>
module attributes {stable_mosaic.version = 11 : i64} {
  func.func @_proj_residual_kernel(%arg0: i32, %arg1: memref<56x128xf32, #tpu.memory_space<vmem>>, %arg2: memref<56x32xf32, #tpu.memory_space<vmem>>, %arg3: memref<32x128xf32, #tpu.memory_space<vmem>>, %arg4: memref<56x128xf32, #tpu.memory_space<vmem>>) attributes {dimension_semantics = [#tpu.dimension_semantics<parallel>], iteration_bounds = array<i64: 1>, scalar_prefetch = 0 : i64, scratch_operands = 0 : i64, tpu.core_type = #tpu.core_type<tc>, window_params = [{transform_indices = @transform_0, window_bounds = array<i64: 56, 128>}, {transform_indices = @transform_1, window_bounds = array<i64: 56, 32>}, {pipeline_mode = #tpu.pipeline_mode<synchronous>, transform_indices = @transform_2, window_bounds = array<i64: 32, 128>}, {transform_indices = @transform_3, window_bounds = array<i64: 56, 128>}]} {
    %c0 = arith.constant 0 : index
    %c0_0 = arith.constant 0 : index
    %0 = vector.load %arg2[%c0, %c0_0] : memref<56x32xf32, #tpu.memory_space<vmem>>, vector<56x32xf32>
    %c0_1 = arith.constant 0 : index
    %c0_2 = arith.constant 0 : index
    %1 = vector.load %arg3[%c0_1, %c0_2] : memref<32x128xf32, #tpu.memory_space<vmem>>, vector<32x128xf32>
    %cst = arith.constant dense<0.000000e+00> : vector<56x128xf32>
    %2 = tpu.matmul %0, %1, %cst {dimension_numbers = #tpu.dot_dimension_numbers<[1], [0], [0], [1], [0, 0, 1, 1], [], []>} : vector<56x32xf32>, vector<32x128xf32>, vector<56x128xf32> -> vector<56x128xf32>
    %c0_3 = arith.constant 0 : index
    %c0_4 = arith.constant 0 : index
    %3 = vector.load %arg1[%c0_3, %c0_4] : memref<56x128xf32, #tpu.memory_space<vmem>>, vector<56x128xf32>
    %4 = arith.addf %3, %2 : vector<56x128xf32>
    %cst_5 = arith.constant 0.000000e+00 : f32
    %5 = vector.broadcast %cst_5 : f32 to vector<56x128xf32>
    %6 = arith.cmpf ogt, %4, %5 : vector<56x128xf32>
    %cst_6 = arith.constant 0.000000e+00 : f32
    %7 = vector.broadcast %cst_6 : f32 to vector<56x128xf32>
    %8 = arith.minimumf %4, %7 : vector<56x128xf32>
    %9 = math.exp %8 : vector<56x128xf32>
    %cst_7 = arith.constant 1.000000e+00 : f32
    %10 = vector.broadcast %cst_7 : f32 to vector<56x128xf32>
    %11 = arith.subf %9, %10 : vector<56x128xf32>
    %12 = arith.select %6, %4, %11 : vector<56x128xi1>, vector<56x128xf32>
    %c0_8 = arith.constant 0 : index
    %c0_9 = arith.constant 0 : index
    %13 = vector.load %arg4[%c0_8, %c0_9] : memref<56x128xf32, #tpu.memory_space<vmem>>, vector<56x128xf32>
    tpu.vector_store %arg4[%c0_8, %c0_9], %12 {strides = array<i32>} : memref<56x128xf32, #tpu.memory_space<vmem>>, vector<56x128xf32>,
    return
  }
  func.func @transform_0(%arg0: i32) -> (i32, i32) {
    %c0_i32 = arith.constant 0 : i32
    %c0_i32_0 = arith.constant 0 : i32
    return %arg0, %c0_i32 : i32, i32
  }
  func.func @transform_1(%arg0: i32) -> (i32, i32) {
    %c0_i32 = arith.constant 0 : i32
    %c0_i32_0 = arith.constant 0 : i32
    return %arg0, %c0_i32 : i32, i32
  }
  func.func @transform_2(%arg0: i32) -> (i32, i32) {
    %c0_i32 = arith.constant 0 : i32
    %c0_i32_0 = arith.constant 0 : i32
    %c0_i32_1 = arith.constant 0 : i32
    return %c0_i32, %c0_i32_0 : i32, i32
  }
  func.func @transform_3(%arg0: i32) -> (i32, i32) {
    %c0_i32 = arith.constant 0 : i32
    %c0_i32_0 = arith.constant 0 : i32
    return %arg0, %c0_i32 : i32, i32
  }
}

</mosaic_0001>

<llo_original>
// kernel: tpu_custom_call.1
$region0: #{tpu_custom_call.1}
  #allocation0 [shape = 'u32[]', space=smem, size = 0x4, offset = 0x4, fixed_abs, tag = 'smem constant byte address 0x4 - core index']
  #allocation1 [shape = 'u32[72,128]{1,0:T(1,128)}', space=vmem, size = 0x9000, scoped, tag = 'internal scratch']
  %s0 = inlined_call_operand.vmem [shape: f32[50,128], index: 0, kind: input, shape index: {}]
  %s1 = inlined_call_operand.vmem [shape: f32[50,32], index: 1, kind: input, shape index: {}]
  %s2 = inlined_call_operand.vmem [shape: f32[32,128], index: 2, kind: input, shape index: {}]
  %s3 = inlined_call_operand.hbm [shape: f32[50,128], index: 3, kind: output, shape index: {}]
  %s4 = sld [smem:[#allocation0]]
  $region22: #{tpu_custom_call.1} parent=0
    _
  %s6 = ssub.s32 1, %s4
  %s7 = scalar_select 0, %s6, %s4
  $region1: #{tpu_custom_call.1} parent=0
    #allocation2 [shape = 'u8[28672]{0}', space=vmem, size = 0x7000, scoped, tag = 'output window, operand 0, single buffered']
    #allocation3 [shape = 's32[1]{0}', space=sflag, size = 0x4, scoped, tag = 'scoped memory for tpu_custom_call.1']
    %8 = vsyncpa [#allocation3], 0
    // Predicated region
    $region2: #{tpu_custom_call.1} parent=1 // pred_check
      _
    $region3: #{tpu_custom_call.1} parent=1 // pred_check_branch
      %10 = sbr.rel (0) target = $region5
    $region4: #{tpu_custom_call.1} parent=1 // pred_region
      _
    $region5: #{tpu_custom_call.1} parent=1 // pred_fallthru
      _
    // Predicated region
    $region6: #{tpu_custom_call.1} parent=1 // pred_check
      _
    $region7: #{tpu_custom_call.1} parent=1 // pred_check_branch
      %12 = sbr.rel (0) target = $region9
    $region8: #{tpu_custom_call.1} parent=1 // pred_region
      _
    $region9: #{tpu_custom_call.1} parent=1 // pred_fallthru
      _
    // Predicated region
    $region10: #{tpu_custom_call.1} parent=1 // pred_check
      _
    $region11: #{tpu_custom_call.1} parent=1 // pred_check_branch
      %14 = sbr.rel (0) target = $region13
    $region12: #{tpu_custom_call.1} parent=1 // pred_region
      _
    $region13: #{tpu_custom_call.1} parent=1 // pred_fallthru
      _
    %v15 = vld [vmem:[%s1] sm:$0xff]
    %v16 = vld [vmem:[%s1 + $0x8] sm:$0xff]
    %v17 = vld [vmem:[%s1 + $0x10] sm:$0xff]
    %v18 = vld [vmem:[%s1 + $0x18] sm:$0xff]
    %v19 = vld [vmem:[%s1 + $0x20] sm:$0xff]
    %v20 = vld [vmem:[%s1 + $0x28] sm:$0xff]
    %v21 = vld [vmem:[%s1 + $0x30] sm:$0xff]
    %v22 = vld [vmem:[%s2] sm:$0xff]
    %v23 = vld [vmem:[%s2 + $0x8] sm:$0xff]
    %v24 = vld [vmem:[%s2 + $0x10] sm:$0xff]
    %v25 = vld [vmem:[%s2 + $0x18] sm:$0xff]
    %vm26 = vcmask 261120
    %v28 = vsel %vm26, %v15, 0
    %v31 = vsel %vm26, %v16, 0
    %v34 = vsel %vm26, %v17, 0
    %v37 = vsel %vm26, %v18, 0
    %v40 = vsel %vm26, %v19, 0
    %v43 = vsel %vm26, %v20, 0
    %v46 = vsel %vm26, %v21, 0
    %48 = vmatpush.msra.mxu0 0.0
    %49 = vmatpush.msra.mxu0 0.0
    %50 = vmatpush.msra.mxu0 0.0
    %51 = vmatpush.msra.mxu0 0.0
    %52 = vmatpush.msra.mxu0 0.0
    %53 = vmatpush.msra.mxu0 0.0
    %54 = vmatpush.msra.mxu0 0.0
    %55 = vmatpush.msra.mxu0 0.0
    %56 = vmatpush.msra.mxu0 0.0
    %57 = vmatpush.msra.mxu0 0.0
    %58 = vmatpush.msra.mxu0 0.0
    %59 = vmatpush.msra.mxu0 0.0
    %60 = vmatpush.msra.mxu0 %v25
    %61 = vmatpush.msra.mxu0 %v24
    %62 = vmatpush.msra.mxu0 %v23
    %63 = vmatpush.msra.mxu0 %v22
    %64 = vmatmul.f32.gmra.mxu0 %v28
    %v65 = vpop.f32.mrf.mxu0
    %v66 = vadd.f32 0.0, %v65
    %67 = vmatmul.f32.gmra.mxu0 %v31
    %v68 = vpop.f32.mrf.mxu0
    %v69 = vadd.f32 0.0, %v68
    %70 = vmatmul.f32.gmra.mxu0 %v34
    %v71 = vpop.f32.mrf.mxu0
    %v72 = vadd.f32 0.0, %v71
    %73 = vmatmul.f32.gmra.mxu0 %v37
    %v74 = vpop.f32.mrf.mxu0
    %v75 = vadd.f32 0.0, %v74
    %76 = vmatmul.f32.gmra.mxu0 %v40
    %v77 = vpop.f32.mrf.mxu0
    %v78 = vadd.f32 0.0, %v77
    %79 = vmatmul.f32.gmra.mxu0 %v43
    %v80 = vpop.f32.mrf.mxu0
    %v81 = vadd.f32 0.0, %v80
    %82 = vmatmul.f32.gmra.mxu0 %v46
    %v83 = vpop.f32.mrf.mxu0
    %v84 = vadd.f32 0.0, %v83
    %85 = vdwg.mxu0
    %v86 = vld [vmem:[%s0] sm:$0xff]
    %v87 = vld [vmem:[%s0 + $0x8] sm:$0xff]
    %v88 = vld [vmem:[%s0 + $0x10] sm:$0xff]
    %v89 = vld [vmem:[%s0 + $0x18] sm:$0xff]
    %v90 = vld [vmem:[%s0 + $0x20] sm:$0xff]
    %v91 = vld [vmem:[%s0 + $0x28] sm:$0xff]
    %v92 = vld [vmem:[%s0 + $0x30] sm:$0xff]
    %v93 = vadd.f32 %v86, %v66
    %v94 = vadd.f32 %v87, %v69
    %v95 = vadd.f32 %v88, %v72
    %v96 = vadd.f32 %v89, %v75
    %v97 = vadd.f32 %v90, %v78
    %v98 = vadd.f32 %v91, %v81
    %v99 = vadd.f32 %v92, %v84
    %vm100 = vcmp.gt.f32.partialorder %v93, 0.0
    %vm101 = vcmp.gt.f32.partialorder %v94, 0.0
    %vm102 = vcmp.gt.f32.partialorder %v95, 0.0
    %vm103 = vcmp.gt.f32.partialorder %v96, 0.0
    %vm104 = vcmp.gt.f32.partialorder %v97, 0.0
    %vm105 = vcmp.gt.f32.partialorder %v98, 0.0
    %vm106 = vcmp.gt.f32.partialorder %v99, 0.0
    %v107 = vmin.f32 %v93, 0.0
    %v108 = vmin.f32 %v94, 0.0
    %v109 = vmin.f32 %v95, 0.0
    %v110 = vmin.f32 %v96, 0.0
    %v111 = vmin.f32 %v97, 0.0
    %v112 = vmin.f32 %v98, 0.0
    %v113 = vmin.f32 %v99, 0.0
    %v114 = vmul.f32 %v107, 1.442695
    %v115 = vpow.pop %v114
    %v116 = vmul.f32 %v108, 1.442695
    %v117 = vpow.pop %v116
    %v118 = vmul.f32 %v109, 1.442695
    %v119 = vpow.pop %v118
    %v120 = vmul.f32 %v110, 1.442695
    %v121 = vpow.pop %v120
    %v122 = vmul.f32 %v111, 1.442695
    %v123 = vpow.pop %v122
    %v124 = vmul.f32 %v112, 1.442695
    %v125 = vpow.pop %v124
    %v126 = vmul.f32 %v113, 1.442695
    %v127 = vpow.pop %v126
    %v128 = vsub.f32 %v115, 1.0
    %v129 = vsub.f32 %v117, 1.0
    %v130 = vsub.f32 %v119, 1.0
    %v131 = vsub.f32 %v121, 1.0
    %v132 = vsub.f32 %v123, 1.0
    %v133 = vsub.f32 %v125, 1.0
    %v134 = vsub.f32 %v127, 1.0
    %v135 = vsel %vm100, %v93, %v128
    %v136 = vsel %vm101, %v94, %v129
    %v137 = vsel %vm102, %v95, %v130
    %v138 = vsel %vm103, %v96, %v131
    %v139 = vsel %vm104, %v97, %v132
    %v140 = vsel %vm105, %v98, %v133
    %v141 = vsel %vm106, %v99, %v134
    %142 = vst [vmem:[#allocation2] sm:$0xff] %v135
    %143 = vst [vmem:[#allocation2 + $0x8] sm:$0xff] %v136
    %144 = vst [vmem:[#allocation2 + $0x10] sm:$0xff] %v137
    %145 = vst [vmem:[#allocation2 + $0x18] sm:$0xff] %v138
    %146 = vst [vmem:[#allocation2 + $0x20] sm:$0xff] %v139
    %147 = vst [vmem:[#allocation2 + $0x28] sm:$0xff] %v140
    %148 = vst [vmem:[#allocation2 + $0x30] sm:$0xff] %v141
    // Predicated region
    $region14: #{tpu_custom_call.1} parent=1 // pred_check
      _
    $region15: #{tpu_custom_call.1} parent=1 // pred_check_branch
      %150 = sbr.rel (0) target = $region17
    $region16: #{tpu_custom_call.1} parent=1 // pred_region
      %152 = vsyncadd [#allocation3], 0
      %s153 = sshll.u32 [#allocation2], 4
      %s154 = int_to_ptr.vmem [resolvable:$true] %s153
      %s155 = sshll.u32 %s3, 4
      %s156 = int_to_ptr.hbm [resolvable:$true] %s155
      %161 = dma.vmem_to_hbm [thread:$0]  %s154, 896, %s156, [#allocation3], 128, 128, 8
    $region17: #{tpu_custom_call.1} parent=1 // pred_fallthru
      _
    // Predicated region
    $region18: #{tpu_custom_call.1} parent=1 // pred_check
      _
    $region19: #{tpu_custom_call.1} parent=1 // pred_check_branch
      %163 = sbr.rel (0) target = $region21
    $region20: #{tpu_custom_call.1} parent=1 // pred_region
      %165 = dma.done [#allocation3], 896
    $region21: #{tpu_custom_call.1} parent=1 // pred_fallthru
      _
    %166 = vsyncpa [#allocation3], 1

</llo_original>
